<compile_context>
chip_gen: v5e
topology: v5e:2x2
jax: 0.10.0
libtpu: 0.0.40
codegen_flags: <defaults>
</compile_context>

<pallas_src>
import jax
import jax.numpy as jnp
from jax.experimental import pallas as pl
from jax.experimental.pallas import tpu as pltpu

_LANE = 128     # lane (fast) axis granularity
_SUBLANE = 8    # sublane granularity for 32-bit types


def _round_up(v, m):
    return ((v + m - 1) // m) * m


def _cdiv(a, b):
    return (a + b - 1) // b


def _sublane_tile(dtype):
    """Second-minor tiling granularity: 8 (32-bit), 16 (16-bit), 32 (8-bit)."""
    itemsize = jnp.dtype(dtype).itemsize
    return _SUBLANE * max(1, 4 // max(itemsize, 1))


def _merger_kernel(s_ref, x_ref, o_ref):
    """o = sum_h s[h] * x[:, h, :]  (per-head accumulate, f32 accumulator).

    s_ref: [head, tile_fea]          float32 softmax(weight), precomputed
    x_ref: [tile_bs, head, tile_fea] input dtype
    o_ref: [tile_bs, tile_fea]       input dtype
    """
    head = x_ref.shape[1]
    acc = x_ref[:, 0, :].astype(jnp.float32) * s_ref[0:1, :]
    for h in range(1, head):  # head is a small static int -> fully unrolled
        acc = acc + x_ref[:, h, :].astype(jnp.float32) * s_ref[h:h + 1, :]
    o_ref[...] = acc.astype(o_ref.dtype)


def merger_forward(x, weight, *, head, tile_bs=None, tile_fea=None,
                   fea_tile_cap=2048,
                   vmem_budget_bytes=36 << 20,
                   vmem_limit_bytes=48 << 20,
                   min_pallas_bytes=256 << 10):
    """Pallas implementation of Merger.forward.

    x:      [bs, head, fea_dim]
    weight: [1, head, fea_dim]   (only used when head > 1)
    """
    bs, h, fea_dim = x.shape
    assert h == head

    if head == 1:
        # th.squeeze(x, dim=1): pure layout op, no kernel needed.
        return jnp.squeeze(x, axis=1)

    itemsize = jnp.dtype(x.dtype).itemsize

    # Small-input fallback: pallas_call fixed overhead dominates; the fused
    # XLA elementwise expression is strictly faster there.
    if x.size * itemsize < min_pallas_bytes and tile_bs is None and tile_fea is None:
        s = jax.nn.softmax(weight.astype(jnp.float32), axis=1)
        return jnp.sum(s * x.astype(jnp.float32), axis=1).astype(x.dtype)

    head_pad = _round_up(head, _sublane_tile(x.dtype))  # VMEM sublane padding

    # --- feature tile --------------------------------------------------------
    # Either a multiple of 128 (lane-dense) or the full feature dim (always a
    # legal block shape, even when fea_dim is not 128-aligned).
    if tile_fea is None:
        tile_fea = fea_dim if fea_dim <= fea_tile_cap else fea_tile_cap
    else:
        tile_fea = min(int(tile_fea), fea_dim)
    if tile_fea != fea_dim:
        tile_fea = max(_LANE, (tile_fea // _LANE) * _LANE)

    # --- batch tile: budget the whole double-buffered working set -----------
    # Per batch row (bytes): x block (head padded to the sublane tile, two
    # pipeline buffers) + out block (two buffers) + ~3 f32 temporaries.
    bytes_per_row = tile_fea * (2 * head_pad * itemsize + 2 * itemsize + 12)
    if tile_bs is None:
        tile_bs = max(_SUBLANE, vmem_budget_bytes // bytes_per_row)
    tile_bs = int(tile_bs)
    if tile_bs >= bs:
        tile_bs = bs                                   # full dim: always legal
    else:
        tile_bs = max(_SUBLANE, (tile_bs // _SUBLANE) * _SUBLANE)

    n_i = _cdiv(bs, tile_bs)       # batch blocks
    n_j = _cdiv(fea_dim, tile_fea)  # feature blocks

    # --- ensure >= 2 parallel blocks so both v7x TensorCores get work --------
    if n_i == 1 and n_j == 1:
        if bs >= 2 * _SUBLANE:
            tile_bs = _round_up(_cdiv(bs, 2), _SUBLANE)
            n_i = _cdiv(bs, tile_bs)
        elif fea_dim >= 2 * _LANE:
            tile_fea = _round_up(_cdiv(fea_dim, 2), _LANE)
            n_j = _cdiv(fea_dim, tile_fea)

    # --- softmax(weight): computed once; pad so every s block is full -------
    s = jax.nn.softmax(weight.astype(jnp.float32).reshape(head, fea_dim), axis=0)
    fea_pad = n_j * tile_fea
    if fea_pad != fea_dim:
        s = jnp.pad(s, ((0, 0), (0, fea_pad - fea_dim)))  # tiny table only

    out_bytes = bs * fea_dim * itemsize
    grid = (n_j, n_i)  # batch innermost: s block index constant between
                       # consecutive steps -> its re-DMA is skipped.

    out = pl.pallas_call(
        _merger_kernel,
        out_shape=jax.ShapeDtypeStruct((bs, fea_dim), x.dtype),
        grid_spec=pltpu.PrefetchScalarGridSpec(
            num_scalar_prefetch=0,
            grid=grid,
            in_specs=[
                # softmax(weight): follows the feature tiling only.
                pl.BlockSpec((head, tile_fea), lambda j, i: (0, j)),
                # x: one (batch tile, all heads, feature tile) block per step;
                # edge blocks are partial and masked by Pallas (no jnp.pad).
                pl.BlockSpec((tile_bs, head, tile_fea),
                             lambda j, i: (i, 0, j)),
            ],
            out_specs=pl.BlockSpec((tile_bs, tile_fea), lambda j, i: (i, j)),
        ),
        compiler_params=pltpu.CompilerParams(
            # Both axes independent -> megacore sharding on v7x; no-op on
            # single-TC v5e/v6e.
            dimension_semantics=("parallel", "parallel"),
            # ~36 MiB working set under a 48 MiB cap: fits v7x's 64 MiB
            # physical VMEM with headroom; plenty of room on v5e/v6e (128 MiB).
            vmem_limit_bytes=vmem_limit_bytes,
        ),
        cost_estimate=pl.CostEstimate(
            flops=2 * bs * head * fea_dim,
            transcendentals=0,
            bytes_accessed=x.size * itemsize + out_bytes + s.size * 4,
        ),
    )(s, x)
    return out


def merger_reference(x, weight, *, head):
    """Pure-JAX reference mirroring the PyTorch module (f32 math)."""
    if head == 1:
        return jnp.squeeze(x, axis=1)
    s = jax.nn.softmax(weight.astype(jnp.float32), axis=1)   # [1, head, fea]
    return jnp.sum(s * x.astype(jnp.float32), axis=1)        # [bs, fea]


if __name__ == "__main__":
    key = jax.random.PRNGKey(0)
    k1, k2, k3, k4, k5 = jax.random.split(key, 5)

    # --- 1) module-consistent small shape, forced through the Pallas path ---
    bs, head, fea = 2, 4, 32
    x = jax.random.normal(k1, (bs, head, fea), dtype=jnp.float32)
    w = jnp.ones((1, head, fea), jnp.float32) \
        + 0.1 * jax.random.normal(k2, (1, head, fea), jnp.float32)
    out = jax.block_until_ready(
        merger_forward(x, w, head=head, min_pallas_bytes=0))
    ref = merger_reference(x, w, head=head)
    assert out.shape == (bs, fea)
    assert jnp.allclose(out, ref, atol=1e-5, rtol=1e-5), "mismatch (tiny)"

    # --- 1b) default path (small-input XLA fallback) gives the same answer --
    out_fb = jax.block_until_ready(merger_forward(x, w, head=head))
    assert jnp.allclose(out_fb, ref, atol=1e-5, rtol=1e-5), "mismatch (fallback)"

    # --- 2) unaligned bs / fea: cdiv grid + masked edge blocks, no padding ---
    bs2, fea2 = 100, 200
    x2 = jax.random.normal(k3, (bs2, head, fea2), dtype=jnp.float32)
    w2 = jnp.ones((1, head, fea2), jnp.float32) \
        + 0.1 * jax.random.normal(k4, (1, head, fea2), jnp.float32)
    out2 = jax.block_until_ready(
        merger_forward(x2, w2, head=head, min_pallas_bytes=0))
    ref2 = merger_reference(x2, w2, head=head)
    assert out2.shape == (bs2, fea2)
    assert jnp.allclose(out2, ref2, atol=1e-5, rtol=1e-5), "mismatch (unaligned)"

    # --- 3) explicit 2x2 grid with a partial feature edge block -------------
    bs3, fea3 = 96, 384
    x3 = jax.random.normal(k5, (bs3, head, fea3), dtype=jnp.float32)
    w3 = jnp.ones((1, head, fea3), jnp.float32) \
        + 0.1 * jax.random.normal(k2, (1, head, fea3), jnp.float32)
    out3 = jax.block_until_ready(
        merger_forward(x3, w3, head=head, tile_bs=48, tile_fea=256,
                       min_pallas_bytes=0))
    ref3 = merger_reference(x3, w3, head=head)
    assert jnp.allclose(out3, ref3, atol=1e-5, rtol=1e-5), "mismatch (tiled)"

    # --- 4) bf16 input: exercises dtype-dependent sublane-padding sizing ----
    bs4, fea4 = 128, 256
    x4 = jax.random.normal(k1, (bs4, head, fea4), dtype=jnp.float32).astype(jnp.bfloat16)
    w4 = jnp.ones((1, head, fea4), jnp.float32) \
        + 0.1 * jax.random.normal(k3, (1, head, fea4), jnp.float32)
    out4 = jax.block_until_ready(
        merger_forward(x4, w4, head=head, min_pallas_bytes=0))
    ref4 = merger_reference(x4, w4, head=head)
    assert out4.dtype == jnp.bfloat16
    assert jnp.allclose(out4.astype(jnp.float32), ref4, atol=2e-2, rtol=2e-2), \
        "mismatch (bf16)"

    # --- 5) head == 1 path (no weights / no softmax) -------------------------
    x1 = jax.random.normal(k4, (bs, 1, fea), dtype=jnp.float32)
    out1 = jax.block_until_ready(merger_forward(x1, None, head=1))
    assert jnp.allclose(out1, jnp.squeeze(x1, axis=1))

    print("KERNEL_OK")
</pallas_src>

<mosaic_0001>
module attributes {stable_mosaic.version = 11 : i64} {
  func.func @_merger_kernel(%arg0: i32, %arg1: i32, %arg2: memref<4x32xf32, #tpu.memory_space<vmem>>, %arg3: memref<2x4x32xf32, #tpu.memory_space<vmem>>, %arg4: memref<2x32xf32, #tpu.memory_space<vmem>>) attributes {dimension_semantics = [#tpu.dimension_semantics<parallel>, #tpu.dimension_semantics<parallel>], iteration_bounds = array<i64: 1, 1>, scalar_prefetch = 0 : i64, scratch_operands = 0 : i64, tpu.core_type = #tpu.core_type<tc>, window_params = [{transform_indices = @transform_0, window_bounds = array<i64: 4, 32>}, {transform_indices = @transform_1, window_bounds = array<i64: 2, 4, 32>}, {transform_indices = @transform_2, window_bounds = array<i64: 2, 32>}]} {
    %c0 = arith.constant 0 : index
    %c0_0 = arith.constant 0 : index
    %c0_1 = arith.constant 0 : index
    %0 = vector.load %arg3[%c0, %c0_0, %c0_1] : memref<2x4x32xf32, #tpu.memory_space<vmem>>, vector<2x1x32xf32>
    %1 = vector.shape_cast %0 : vector<2x1x32xf32> to vector<2x32xf32>
    %c0_2 = arith.constant 0 : index
    %c0_3 = arith.constant 0 : index
    %2 = vector.load %arg2[%c0_2, %c0_3] : memref<4x32xf32, #tpu.memory_space<vmem>>, vector<1x32xf32>
    %3 = vector.broadcast %2 : vector<1x32xf32> to vector<2x32xf32>
    %4 = arith.mulf %1, %3 : vector<2x32xf32>
    %c0_4 = arith.constant 0 : index
    %c1 = arith.constant 1 : index
    %c0_5 = arith.constant 0 : index
    %5 = vector.load %arg3[%c0_4, %c1, %c0_5] : memref<2x4x32xf32, #tpu.memory_space<vmem>>, vector<2x1x32xf32>
    %6 = vector.shape_cast %5 : vector<2x1x32xf32> to vector<2x32xf32>
    %c1_6 = arith.constant 1 : index
    %c0_7 = arith.constant 0 : index
    %7 = vector.load %arg2[%c1_6, %c0_7] : memref<4x32xf32, #tpu.memory_space<vmem>>, vector<1x32xf32>
    %8 = vector.broadcast %7 : vector<1x32xf32> to vector<2x32xf32>
    %9 = arith.mulf %6, %8 : vector<2x32xf32>
    %10 = arith.addf %4, %9 : vector<2x32xf32>
    %c0_8 = arith.constant 0 : index
    %c2 = arith.constant 2 : index
    %c0_9 = arith.constant 0 : index
    %11 = vector.load %arg3[%c0_8, %c2, %c0_9] : memref<2x4x32xf32, #tpu.memory_space<vmem>>, vector<2x1x32xf32>
    %12 = vector.shape_cast %11 : vector<2x1x32xf32> to vector<2x32xf32>
    %c2_10 = arith.constant 2 : index
    %c0_11 = arith.constant 0 : index
    %13 = vector.load %arg2[%c2_10, %c0_11] : memref<4x32xf32, #tpu.memory_space<vmem>>, vector<1x32xf32>
    %14 = vector.broadcast %13 : vector<1x32xf32> to vector<2x32xf32>
    %15 = arith.mulf %12, %14 : vector<2x32xf32>
    %16 = arith.addf %10, %15 : vector<2x32xf32>
    %c0_12 = arith.constant 0 : index
    %c3 = arith.constant 3 : index
    %c0_13 = arith.constant 0 : index
    %17 = vector.load %arg3[%c0_12, %c3, %c0_13] : memref<2x4x32xf32, #tpu.memory_space<vmem>>, vector<2x1x32xf32>
    %18 = vector.shape_cast %17 : vector<2x1x32xf32> to vector<2x32xf32>
    %c3_14 = arith.constant 3 : index
    %c0_15 = arith.constant 0 : index
    %19 = vector.load %arg2[%c3_14, %c0_15] : memref<4x32xf32, #tpu.memory_space<vmem>>, vector<1x32xf32>
    %20 = vector.broadcast %19 : vector<1x32xf32> to vector<2x32xf32>
    %21 = arith.mulf %18, %20 : vector<2x32xf32>
    %22 = arith.addf %16, %21 : vector<2x32xf32>
    %c0_16 = arith.constant 0 : index
    %c0_17 = arith.constant 0 : index
    %23 = vector.load %arg4[%c0_16, %c0_17] : memref<2x32xf32, #tpu.memory_space<vmem>>, vector<2x32xf32>
    tpu.vector_store %arg4[%c0_16, %c0_17], %22 {strides = array<i32>} : memref<2x32xf32, #tpu.memory_space<vmem>>, vector<2x32xf32>,
    return
  }
  func.func @transform_0(%arg0: i32, %arg1: i32) -> (i32, i32) {
    %c0_i32 = arith.constant 0 : i32
    %c0_i32_0 = arith.constant 0 : i32
    return %c0_i32, %arg0 : i32, i32
  }
  func.func @transform_1(%arg0: i32, %arg1: i32) -> (i32, i32, i32) {
    %c0_i32 = arith.constant 0 : i32
    %c0_i32_0 = arith.constant 0 : i32
    return %arg1, %c0_i32, %arg0 : i32, i32, i32
  }
  func.func @transform_2(%arg0: i32, %arg1: i32) -> (i32, i32) {
    %c0_i32 = arith.constant 0 : i32
    return %arg1, %arg0 : i32, i32
  }
}

</mosaic_0001>

<llo_original>
// kernel: tpu_custom_call.1
$region0: #{tpu_custom_call.1}
  #allocation0 [shape = 'u32[]', space=smem, size = 0x4, offset = 0x4, fixed_abs, tag = 'smem constant byte address 0x4 - core index']
  #allocation1 [shape = 'u32[72,128]{1,0:T(1,128)}', space=vmem, size = 0x9000, scoped, tag = 'internal scratch']
  %s0 = inlined_call_operand.hbm [shape: f32[4,32], index: 0, kind: input, shape index: {}]
  %s1 = inlined_call_operand.hbm [shape: f32[2,4,32], index: 1, kind: input, shape index: {}]
  %s2 = inlined_call_operand.hbm [shape: f32[2,32], index: 2, kind: output, shape index: {}]
  %s3 = sld [smem:[#allocation0]]
  $region26: #{tpu_custom_call.1} parent=0
    _
  %s5 = ssub.s32 1, %s3
  %s6 = scalar_select 0, %s5, %s3
  $region1: #{tpu_custom_call.1} parent=0
    #allocation2 [shape = 'u8[2048]{0}', space=vmem, size = 0x800, scoped, tag = 'input window, operand 0, single buffered']
    #allocation3 [shape = 's32[1]{0}', space=sflag, size = 0x4, scoped, tag = 'scoped memory for tpu_custom_call.1']
    #allocation4 [shape = 's32[1]{0}', space=sflag, size = 0x4, scoped, tag = 'scoped memory for tpu_custom_call.1']
    #allocation5 [shape = 'u8[4096]{0}', space=vmem, size = 0x1000, scoped, tag = 'input window, operand 1, single buffered']
    #allocation6 [shape = 's32[1]{0}', space=sflag, size = 0x4, scoped, tag = 'scoped memory for tpu_custom_call.1']
    #allocation7 [shape = 'u8[1024]{0}', space=vmem, size = 0x400, scoped, tag = 'output window, operand 0, single buffered']
    %7 = vsyncpa [#allocation3], 0
    %8 = vsyncpa [#allocation6], 0
    %9 = vsyncpa [#allocation4], 0
    // Predicated region
    $region2: #{tpu_custom_call.1} parent=1 // pred_check
      _
    $region3: #{tpu_custom_call.1} parent=1 // pred_check_branch
      %11 = sbr.rel (0) target = $region5
    $region4: #{tpu_custom_call.1} parent=1 // pred_region
      %13 = vsyncadd [#allocation3], 0
      %s15 = sshll.u32 %s0, 4
      %s16 = int_to_ptr.hbm [resolvable:$true] %s15
      %s17 = sshll.u32 [#allocation2], 4
      %s18 = int_to_ptr.vmem [resolvable:$true] %s17
      %20 = dma.hbm_to_vmem [thread:$0]  %s16, 64, %s18, [#allocation3]
    $region5: #{tpu_custom_call.1} parent=1 // pred_fallthru
      _
    // Predicated region
    $region6: #{tpu_custom_call.1} parent=1 // pred_check
      _
    $region7: #{tpu_custom_call.1} parent=1 // pred_check_branch
      %22 = sbr.rel (0) target = $region9
    $region8: #{tpu_custom_call.1} parent=1 // pred_region
      %24 = vsyncadd [#allocation6], 0
      %s25 = sshll.u32 %s1, 4
      %s26 = int_to_ptr.hbm [resolvable:$true] %s25
      %s27 = sshll.u32 [#allocation5], 4
      %s28 = int_to_ptr.vmem [resolvable:$true] %s27
      %33 = dma.hbm_to_vmem [thread:$0]  %s26, 128, %s28, [#allocation6], 64, 64, 4
    $region9: #{tpu_custom_call.1} parent=1 // pred_fallthru
      _
    // Predicated region
    $region10: #{tpu_custom_call.1} parent=1 // pred_check
      _
    $region11: #{tpu_custom_call.1} parent=1 // pred_check_branch
      %35 = sbr.rel (0) target = $region13
    $region12: #{tpu_custom_call.1} parent=1 // pred_region
      %37 = dma.done [#allocation3], 64
    $region13: #{tpu_custom_call.1} parent=1 // pred_fallthru
      _
    // Predicated region
    $region14: #{tpu_custom_call.1} parent=1 // pred_check
      _
    $region15: #{tpu_custom_call.1} parent=1 // pred_check_branch
      %39 = sbr.rel (0) target = $region17
    $region16: #{tpu_custom_call.1} parent=1 // pred_region
      %41 = dma.done [#allocation6], 128
    $region17: #{tpu_custom_call.1} parent=1 // pred_fallthru
      _
    %v42 = vld [vmem:[#allocation5] sm:$0x1]
    %v43 = vld [vmem:[#allocation5 + $0x4] sm:$0x1]
    %v44 = vld [vmem:[#allocation2] sm:$0x1]
    %v45 = vperm.slane %v44, 0
    %v46 = vmul.f32 %v42, %v45
    %v47 = vmul.f32 %v43, %v45
    %v48 = vld [vmem:[#allocation5 + $0x1] sm:$0x1]
    %v49 = vld [vmem:[#allocation5 + $0x5] sm:$0x1]
    %v50 = vld [vmem:[#allocation2 + $0x1] sm:$0x1]
    %v51 = vperm.slane %v50, 0
    %v52 = vmul.f32 %v48, %v51
    %v53 = vmul.f32 %v49, %v51
    %v54 = vadd.f32 %v46, %v52
    %v55 = vadd.f32 %v47, %v53
    %v56 = vld [vmem:[#allocation5 + $0x2] sm:$0x1]
    %v57 = vld [vmem:[#allocation5 + $0x6] sm:$0x1]
    %v58 = vld [vmem:[#allocation2 + $0x2] sm:$0x1]
    %v59 = vperm.slane %v58, 0
    %v60 = vmul.f32 %v56, %v59
    %v61 = vmul.f32 %v57, %v59
    %v62 = vadd.f32 %v54, %v60
    %v63 = vadd.f32 %v55, %v61
    %v64 = vld [vmem:[#allocation5 + $0x3] sm:$0x1]
    %v65 = vld [vmem:[#allocation5 + $0x7] sm:$0x1]
    %v66 = vld [vmem:[#allocation2 + $0x3] sm:$0x1]
    %v67 = vperm.slane %v66, 0
    %v68 = vmul.f32 %v64, %v67
    %v69 = vmul.f32 %v65, %v67
    %v70 = vadd.f32 %v62, %v68
    %v71 = vadd.f32 %v63, %v69
    %v74 = vrot.slane %v71, 7
    %vm75 = vcmask 1041409
    %v76 = vsel %vm75, %v74, %v70
    %vm78 = vcmask 254976
    %79 = vst.msk [vmem:[#allocation7] sm:$0x3] %vm78, %v76
    // Predicated region
    $region18: #{tpu_custom_call.1} parent=1 // pred_check
      _
    $region19: #{tpu_custom_call.1} parent=1 // pred_check_branch
      %81 = sbr.rel (0) target = $region21
    $region20: #{tpu_custom_call.1} parent=1 // pred_region
      %83 = vsyncadd [#allocation4], 0
      %s85 = sshll.u32 [#allocation7], 4
      %s86 = int_to_ptr.vmem [resolvable:$true] %s85
      %s87 = sshll.u32 %s2, 4
      %s88 = int_to_ptr.hbm [resolvable:$true] %s87
      %90 = dma.vmem_to_hbm [thread:$0]  %s86, 32, %s88, [#allocation4]
    $region21: #{tpu_custom_call.1} parent=1 // pred_fallthru
      _
    // Predicated region
    $region22: #{tpu_custom_call.1} parent=1 // pred_check
      _
    $region23: #{tpu_custom_call.1} parent=1 // pred_check_branch
      %92 = sbr.rel (0) target = $region25
    $region24: #{tpu_custom_call.1} parent=1 // pred_region
      %94 = dma.done [#allocation4], 32
    $region25: #{tpu_custom_call.1} parent=1 // pred_fallthru
      _
    %95 = vsyncpa [#allocation3], 1
    %96 = vsyncpa [#allocation6], 1
    %97 = vsyncpa [#allocation4], 1

</llo_original>
